<compile_context>
chip_gen: v6e
topology: v6e:2x2x1
jax: 0.10.0
libtpu: 0.0.40
codegen_flags: <defaults>
</compile_context>

<pallas_src>
import math
import functools

import jax
import jax.numpy as jnp
import numpy as np
from jax import lax
from jax.experimental import pallas as pl

# hyperparameters implied by the module (small, synthetic)
EMBED = 32          # hp.embedding_size
FFN = 64            # hp.dim_feedforward
NUM_HEADS = 4
HEAD_DIM = EMBED // NUM_HEADS
BATCH = 2
SEQ = 8
EPS = 1e-5

# parameter-slab layout (leading index of the packed (7, 64, 96) buffer)
IDX_WQKV, IDX_WO, IDX_W1, IDX_W2, IDX_HMASK, IDX_AMASK, IDX_VEC = range(7)
# rows of the vector block (slab index IDX_VEC)
VEC_LN1W, VEC_LN1B, VEC_BQKV, VEC_BOUT, VEC_LN2W, VEC_LN2B, VEC_B1, VEC_B2 = range(8)


def _layer_norm(v, w, b):
    mu = jnp.mean(v, axis=-1, keepdims=True)
    var = jnp.mean((v - mu) ** 2, axis=-1, keepdims=True)
    return (v - mu) * lax.rsqrt(var + EPS) * w + b


def encoder_block_kernel(x_ref, p_ref, o_ref, *,
                         batch, seq, num_heads, head_dim, ffn):
    """Single-invocation kernel: the whole (B*S, E) problem lives in VMEM."""
    E = num_heads * head_dim
    T = batch * seq
    HT = num_heads * T

    def mat(i, r, c):                       # static, zero-offset slab slices
        return p_ref[i][:r, :c]

    vec = p_ref[IDX_VEC]                    # (64, 96) vector block

    def vrow(i, w):                         # (1, w) bias / LN vector
        return vec[i:i + 1, :w]

    x = x_ref[...].astype(jnp.float32)                                   # (T, E)

    # ---- LayerNorm 1 ----
    ln1 = _layer_norm(x, vrow(VEC_LN1W, E), vrow(VEC_LN1B, E))

    # ---- fused QKV projection: ONE matmul (softmax scale pre-folded into Q) ----
    qkv = jnp.dot(ln1, mat(IDX_WQKV, E, 3 * E),
                  preferred_element_type=jnp.float32) + vrow(VEC_BQKV, 3 * E)
    q = qkv[:, :E]                                                       # (T, E)
    k = qkv[:, E:2 * E]                                                  # (T, E)
    v = qkv[:, 2 * E:3 * E]                                              # (T, E)

    # ---- head-block-diagonal attention: no per-head loop, no concats ----
    hmask = mat(IDX_HMASK, HT, E)           # 1.0 where feature col belongs to row's head
    # replicate queries along the sublane dim (cheap) and zero non-head features
    q_bd = jnp.concatenate([q] * num_heads, axis=0) * hmask              # (HT, E)
    # scores for ALL heads/batches in one matmul; K consumed transposed by
    # dot_general (TRANS_B dims) -> no explicit per-head transpose.
    s = lax.dot_general(q_bd, k, (((1,), (1,)), ((), ())),
                        preferred_element_type=jnp.float32)              # (HT, T)
    s = s + mat(IDX_AMASK, HT, T)           # block-diagonal batch mask (-1e30 off-block)
    # TODO(synk): fold user attn_mask / key_padding_mask in as extra additive terms here.

    # ---- single softmax pass over all heads & batches ----
    s = s - jnp.max(s, axis=-1, keepdims=True)
    p = jnp.exp(s)
    denom = jnp.sum(p, axis=-1, keepdims=True)
    r = pl.reciprocal(denom, approx=True)
    r = r * (2.0 - denom * r)               # one Newton step -> ~exact f32 reciprocal
    p = p * r                                                            # (HT, T)

    # ---- all per-head contexts in ONE matmul, masked into PyTorch column order ----
    ctx_big = jnp.dot(p, v, preferred_element_type=jnp.float32) * hmask  # (HT, E)
    ctx = ctx_big[0:T]
    for h in range(1, num_heads):           # 3 sublane-aligned VPU adds
        ctx = ctx + ctx_big[h * T:(h + 1) * T]                           # (T, E)

    attn = jnp.dot(ctx, mat(IDX_WO, E, E),
                   preferred_element_type=jnp.float32) + vrow(VEC_BOUT, E)

    # dropout_1 = identity (eval); residual
    x = x + attn

    # ---- LayerNorm 2 + FFN ----
    ln2 = _layer_norm(x, vrow(VEC_LN2W, E), vrow(VEC_LN2B, E))
    h1 = jnp.dot(ln2, mat(IDX_W1, E, ffn),
                 preferred_element_type=jnp.float32) + vrow(VEC_B1, ffn)
    h1 = jnp.maximum(h1, 0.0)                                            # ReLU
    ff = jnp.dot(h1, mat(IDX_W2, ffn, E),
                 preferred_element_type=jnp.float32) + vrow(VEC_B2, E)

    # dropout_2 / dropout_3 = identity (eval); residual
    o_ref[...] = (x + ff).astype(o_ref.dtype)


def prepare_params(p, batch=BATCH, seq=SEQ, num_heads=NUM_HEADS):
    """One-time prep (off the hot path): fold the 1/sqrt(head_dim) scale into
    the Q block, transpose weights, build the head / batch mask constants and
    pack EVERYTHING into a single zero-padded f32 slab (7, 64, 96)."""
    E = p["w_out"].shape[0]
    Dh = E // num_heads
    T = batch * seq
    HT = num_heads * T
    scale = 1.0 / math.sqrt(Dh)

    qkv_scale = jnp.concatenate([jnp.full((E,), scale, jnp.float32),
                                 jnp.ones((2 * E,), jnp.float32)])
    w_qkv_t = (p["w_qkv"] * qkv_scale[:, None]).T.astype(jnp.float32)    # (E, 3E)
    b_qkv = (p["b_qkv"] * qkv_scale).astype(jnp.float32)                 # (3E,)

    wo_t = p["w_out"].T.astype(jnp.float32)                              # (E, E)
    w1_t = p["w1"].T.astype(jnp.float32)                                 # (E, F)
    w2_t = p["w2"].T.astype(jnp.float32)                                 # (F, E)

    # head-block-diagonal constants:  slab row index = h*T + r
    row = jnp.arange(HT)
    head_of_row = row // T
    tok_of_row = row % T
    headmask = (head_of_row[:, None] == (jnp.arange(E) // Dh)[None, :]
                ).astype(jnp.float32)                                    # (HT, E)
    same_batch = (tok_of_row[:, None] // seq) == (jnp.arange(T) // seq)[None, :]
    amask = jnp.where(same_batch, 0.0, -1e30).astype(jnp.float32)        # (HT, T)

    # the 8 small vectors -> one (8, 3E) block
    vecs = [p["ln1_w"], p["ln1_b"], b_qkv, p["b_out"],
            p["ln2_w"], p["ln2_b"], p["b1"], p["b2"]]
    vec_blk = jnp.stack(
        [jnp.pad(v.astype(jnp.float32), (0, 3 * E - v.shape[0])) for v in vecs])

    mats = [w_qkv_t, wo_t, w1_t, w2_t, headmask, amask, vec_blk]
    pad_r = max(m.shape[0] for m in mats)
    pad_c = max(m.shape[1] for m in mats)
    slab = jnp.stack([jnp.pad(m, ((0, pad_r - m.shape[0]),
                                  (0, pad_c - m.shape[1]))) for m in mats])
    return slab                                                          # (7, 64, 96)


def encoder_block(x, param_slab):
    """x: (B, S, E) float32.  param_slab: output of prepare_params()."""
    B, S, E = x.shape
    x2 = x.reshape(B * S, E)                # contiguous -> free reshape

    kernel = functools.partial(encoder_block_kernel,
                               batch=B, seq=S,
                               num_heads=NUM_HEADS, head_dim=E // NUM_HEADS,
                               ffn=FFN)

    out = pl.pallas_call(
        kernel,
        out_shape=jax.ShapeDtypeStruct((B * S, E), x.dtype),
        # single invocation, no grid: only 2 operands (x + packed param slab),
        # everything fully VMEM-resident (~0.3 MiB total footprint).
    )(x2, param_slab)

    return out.reshape(B, S, E)


def init_params(key):
    ks = jax.random.split(key, 8)
    s = 0.02
    return {
        "ln1_w": jnp.ones((EMBED,), jnp.float32),
        "ln1_b": jnp.zeros((EMBED,), jnp.float32),
        "w_qkv": s * jax.random.normal(ks[0], (3 * EMBED, EMBED), jnp.float32),
        "b_qkv": s * jax.random.normal(ks[1], (3 * EMBED,), jnp.float32),
        "w_out": s * jax.random.normal(ks[2], (EMBED, EMBED), jnp.float32),
        "b_out": s * jax.random.normal(ks[3], (EMBED,), jnp.float32),
        "ln2_w": jnp.ones((EMBED,), jnp.float32),
        "ln2_b": jnp.zeros((EMBED,), jnp.float32),
        "w1": s * jax.random.normal(ks[4], (FFN, EMBED), jnp.float32),
        "b1": s * jax.random.normal(ks[5], (FFN,), jnp.float32),
        "w2": s * jax.random.normal(ks[6], (EMBED, FFN), jnp.float32),
        "b2": s * jax.random.normal(ks[7], (EMBED,), jnp.float32),
    }


def encoder_block_ref(x, p):
    """Pure-JAX reference matching PyTorch semantics (eval mode)."""
    def ln(v, w, b):
        mu = jnp.mean(v, axis=-1, keepdims=True)
        var = jnp.mean((v - mu) ** 2, axis=-1, keepdims=True)
        return (v - mu) * lax.rsqrt(var + EPS) * w + b

    B, S, E = x.shape
    h1 = ln(x, p["ln1_w"], p["ln1_b"])
    qkv = h1 @ p["w_qkv"].T + p["b_qkv"]                          # (B, S, 3E)
    q, k, v = qkv[..., :E], qkv[..., E:2 * E], qkv[..., 2 * E:]
    rs = lambda t: t.reshape(B, S, NUM_HEADS, HEAD_DIM).transpose(0, 2, 1, 3)
    q, k, v = rs(q), rs(k), rs(v)
    scores = jnp.einsum("bhqd,bhkd->bhqk", q, k) / math.sqrt(HEAD_DIM)
    probs = jax.nn.softmax(scores, axis=-1)
    ctx = jnp.einsum("bhqk,bhkd->bhqd", probs, v)
    ctx = ctx.transpose(0, 2, 1, 3).reshape(B, S, E)
    attn = ctx @ p["w_out"].T + p["b_out"]
    x = x + attn
    h2 = ln(x, p["ln2_w"], p["ln2_b"])
    ff = jnp.maximum(h2 @ p["w1"].T + p["b1"], 0.0) @ p["w2"].T + p["b2"]
    return x + ff


if __name__ == "__main__":
    key = jax.random.PRNGKey(0)
    kx, kp = jax.random.split(key)
    x = jax.random.normal(kx, (BATCH, SEQ, EMBED), jnp.float32)
    params = init_params(kp)

    prepped = jax.block_until_ready(prepare_params(params))   # one-time packing

    out = encoder_block(x, prepped)
    out = jax.block_until_ready(out)

    ref = encoder_block_ref(x, params)
    np.testing.assert_allclose(np.asarray(out), np.asarray(ref),
                               rtol=1e-4, atol=1e-4)
    print("KERNEL_OK")
</pallas_src>

<mosaic_0001>
module attributes {stable_mosaic.version = 11 : i64} {
  func.func @encoder_block_kernel(%arg0: memref<16x32xf32, #tpu.memory_space<vmem>>, %arg1: memref<7x64x96xf32, #tpu.memory_space<vmem>>, %arg2: memref<16x32xf32, #tpu.memory_space<vmem>>) attributes {dimension_semantics = [], scalar_prefetch = 0 : i64, scratch_operands = 0 : i64, tpu.core_type = #tpu.core_type<tc>} {
    %c6 = arith.constant 6 : index
    %c0 = arith.constant 0 : index
    %c0_0 = arith.constant 0 : index
    %0 = vector.load %arg1[%c6, %c0, %c0_0] : memref<7x64x96xf32, #tpu.memory_space<vmem>>, vector<1x64x96xf32>
    %1 = vector.shape_cast %0 : vector<1x64x96xf32> to vector<64x96xf32>
    %c0_1 = arith.constant 0 : index
    %c0_2 = arith.constant 0 : index
    %2 = vector.load %arg0[%c0_1, %c0_2] : memref<16x32xf32, #tpu.memory_space<vmem>>, vector<16x32xf32>
    %3 = vector.extract_strided_slice %1 {offsets = [0, 0], sizes = [1, 32], strides = [1, 1]} : vector<64x96xf32> to vector<1x32xf32>
    %4 = vector.extract_strided_slice %1 {offsets = [1, 0], sizes = [1, 32], strides = [1, 1]} : vector<64x96xf32> to vector<1x32xf32>
    %cst = arith.constant dense<0.000000e+00> : vector<16xf32>
    %5 = vector.multi_reduction <add>, %2, %cst [1] : vector<16x32xf32> to vector<16xf32>
    %6 = vector.shape_cast %5 : vector<16xf32> to vector<16x1xf32>
    %cst_3 = arith.constant 3.200000e+01 : f32
    %7 = vector.broadcast %cst_3 : f32 to vector<16x1xf32>
    %8 = arith.divf %6, %7 : vector<16x1xf32>
    %9 = vector.broadcast %8 : vector<16x1xf32> to vector<16x32xf32>
    %10 = arith.subf %2, %9 : vector<16x32xf32>
    %11 = arith.mulf %10, %10 : vector<16x32xf32>
    %cst_4 = arith.constant dense<0.000000e+00> : vector<16xf32>
    %12 = vector.multi_reduction <add>, %11, %cst_4 [1] : vector<16x32xf32> to vector<16xf32>
    %13 = vector.shape_cast %12 : vector<16xf32> to vector<16x1xf32>
    %cst_5 = arith.constant 3.200000e+01 : f32
    %14 = vector.broadcast %cst_5 : f32 to vector<16x1xf32>
    %15 = arith.divf %13, %14 : vector<16x1xf32>
    %16 = vector.broadcast %8 : vector<16x1xf32> to vector<16x32xf32>
    %17 = arith.subf %2, %16 : vector<16x32xf32>
    %cst_6 = arith.constant 9.99999974E-6 : f32
    %18 = vector.broadcast %cst_6 : f32 to vector<16x1xf32>
    %19 = arith.addf %15, %18 : vector<16x1xf32>
    %20 = math.rsqrt %19 : vector<16x1xf32>
    %21 = vector.broadcast %20 : vector<16x1xf32> to vector<16x32xf32>
    %22 = arith.mulf %17, %21 : vector<16x32xf32>
    %23 = vector.broadcast %3 : vector<1x32xf32> to vector<16x32xf32>
    %24 = arith.mulf %22, %23 : vector<16x32xf32>
    %25 = vector.broadcast %4 : vector<1x32xf32> to vector<16x32xf32>
    %26 = arith.addf %24, %25 : vector<16x32xf32>
    %c0_7 = arith.constant 0 : index
    %c0_8 = arith.constant 0 : index
    %c0_9 = arith.constant 0 : index
    %27 = vector.load %arg1[%c0_7, %c0_8, %c0_9] : memref<7x64x96xf32, #tpu.memory_space<vmem>>, vector<1x64x96xf32>
    %28 = vector.shape_cast %27 : vector<1x64x96xf32> to vector<64x96xf32>
    %29 = vector.extract_strided_slice %28 {offsets = [0, 0], sizes = [32, 96], strides = [1, 1]} : vector<64x96xf32> to vector<32x96xf32>
    %cst_10 = arith.constant dense<0.000000e+00> : vector<16x96xf32>
    %30 = tpu.matmul %26, %29, %cst_10 {dimension_numbers = #tpu.dot_dimension_numbers<[1], [0], [0], [1], [0, 0, 1, 1], [], []>} : vector<16x32xf32>, vector<32x96xf32>, vector<16x96xf32> -> vector<16x96xf32>
    %31 = vector.extract_strided_slice %1 {offsets = [2, 0], sizes = [1, 96], strides = [1, 1]} : vector<64x96xf32> to vector<1x96xf32>
    %32 = vector.broadcast %31 : vector<1x96xf32> to vector<16x96xf32>
    %33 = arith.addf %30, %32 : vector<16x96xf32>
    %34 = vector.extract_strided_slice %33 {offsets = [0, 0], sizes = [16, 32], strides = [1, 1]} : vector<16x96xf32> to vector<16x32xf32>
    %35 = vector.extract_strided_slice %33 {offsets = [0, 32], sizes = [16, 32], strides = [1, 1]} : vector<16x96xf32> to vector<16x32xf32>
    %36 = vector.extract_strided_slice %33 {offsets = [0, 64], sizes = [16, 32], strides = [1, 1]} : vector<16x96xf32> to vector<16x32xf32>
    %c4 = arith.constant 4 : index
    %c0_11 = arith.constant 0 : index
    %c0_12 = arith.constant 0 : index
    %37 = vector.load %arg1[%c4, %c0_11, %c0_12] : memref<7x64x96xf32, #tpu.memory_space<vmem>>, vector<1x64x96xf32>
    %38 = vector.shape_cast %37 : vector<1x64x96xf32> to vector<64x96xf32>
    %39 = vector.extract_strided_slice %38 {offsets = [0, 0], sizes = [64, 32], strides = [1, 1]} : vector<64x96xf32> to vector<64x32xf32>
    %40 = tpu.concatenate %34, %34, %34, %34 in 0 : vector<16x32xf32>, vector<16x32xf32>, vector<16x32xf32>, vector<16x32xf32> -> vector<64x32xf32>
    %41 = arith.mulf %40, %39 : vector<64x32xf32>
    %cst_13 = arith.constant dense<0.000000e+00> : vector<64x16xf32>
    %42 = tpu.matmul %41, %35, %cst_13 {dimension_numbers = #tpu.dot_dimension_numbers<[1], [1], [0], [0], [0, 0, 1, 0], [], []>} : vector<64x32xf32>, vector<16x32xf32>, vector<64x16xf32> -> vector<64x16xf32>
    %c5 = arith.constant 5 : index
    %c0_14 = arith.constant 0 : index
    %c0_15 = arith.constant 0 : index
    %43 = vector.load %arg1[%c5, %c0_14, %c0_15] : memref<7x64x96xf32, #tpu.memory_space<vmem>>, vector<1x64x96xf32>
    %44 = vector.shape_cast %43 : vector<1x64x96xf32> to vector<64x96xf32>
    %45 = vector.extract_strided_slice %44 {offsets = [0, 0], sizes = [64, 16], strides = [1, 1]} : vector<64x96xf32> to vector<64x16xf32>
    %46 = arith.addf %42, %45 : vector<64x16xf32>
    %cst_16 = arith.constant dense<0xFF800000> : vector<64xf32>
    %47 = vector.multi_reduction <maximumf>, %46, %cst_16 [1] : vector<64x16xf32> to vector<64xf32>
    %48 = vector.shape_cast %47 : vector<64xf32> to vector<64x1xf32>
    %49 = vector.broadcast %48 : vector<64x1xf32> to vector<64x16xf32>
    %50 = arith.subf %46, %49 : vector<64x16xf32>
    %51 = math.exp %50 : vector<64x16xf32>
    %cst_17 = arith.constant dense<0.000000e+00> : vector<64xf32>
    %52 = vector.multi_reduction <add>, %51, %cst_17 [1] : vector<64x16xf32> to vector<64xf32>
    %53 = vector.shape_cast %52 : vector<64xf32> to vector<64x1xf32>
    %54 = tpu.reciprocal %53 {approx = true} : vector<64x1xf32> -> vector<64x1xf32>
    %55 = arith.mulf %53, %54 : vector<64x1xf32>
    %cst_18 = arith.constant 2.000000e+00 : f32
    %56 = vector.broadcast %cst_18 : f32 to vector<64x1xf32>
    %57 = arith.subf %56, %55 : vector<64x1xf32>
    %58 = arith.mulf %54, %57 : vector<64x1xf32>
    %59 = vector.broadcast %58 : vector<64x1xf32> to vector<64x16xf32>
    %60 = arith.mulf %51, %59 : vector<64x16xf32>
    %cst_19 = arith.constant dense<0.000000e+00> : vector<64x32xf32>
    %61 = tpu.matmul %60, %36, %cst_19 {dimension_numbers = #tpu.dot_dimension_numbers<[1], [0], [0], [1], [0, 0, 1, 1], [], []>} : vector<64x16xf32>, vector<16x32xf32>, vector<64x32xf32> -> vector<64x32xf32>
    %62 = arith.mulf %61, %39 : vector<64x32xf32>
    %63 = vector.extract_strided_slice %62 {offsets = [0, 0], sizes = [16, 32], strides = [1, 1]} : vector<64x32xf32> to vector<16x32xf32>
    %64 = vector.extract_strided_slice %62 {offsets = [16, 0], sizes = [16, 32], strides = [1, 1]} : vector<64x32xf32> to vector<16x32xf32>
    %65 = arith.addf %63, %64 : vector<16x32xf32>
    %66 = vector.extract_strided_slice %62 {offsets = [32, 0], sizes = [16, 32], strides = [1, 1]} : vector<64x32xf32> to vector<16x32xf32>
    %67 = arith.addf %65, %66 : vector<16x32xf32>
    %68 = vector.extract_strided_slice %62 {offsets = [48, 0], sizes = [16, 32], strides = [1, 1]} : vector<64x32xf32> to vector<16x32xf32>
    %69 = arith.addf %67, %68 : vector<16x32xf32>
    %c1 = arith.constant 1 : index
    %c0_20 = arith.constant 0 : index
    %c0_21 = arith.constant 0 : index
    %70 = vector.load %arg1[%c1, %c0_20, %c0_21] : memref<7x64x96xf32, #tpu.memory_space<vmem>>, vector<1x64x96xf32>
    %71 = vector.shape_cast %70 : vector<1x64x96xf32> to vector<64x96xf32>
    %72 = vector.extract_strided_slice %71 {offsets = [0, 0], sizes = [32, 32], strides = [1, 1]} : vector<64x96xf32> to vector<32x32xf32>
    %cst_22 = arith.constant dense<0.000000e+00> : vector<16x32xf32>
    %73 = tpu.matmul %69, %72, %cst_22 {dimension_numbers = #tpu.dot_dimension_numbers<[1], [0], [0], [1], [0, 0, 1, 1], [], []>} : vector<16x32xf32>, vector<32x32xf32>, vector<16x32xf32> -> vector<16x32xf32>
    %74 = vector.extract_strided_slice %1 {offsets = [3, 0], sizes = [1, 32], strides = [1, 1]} : vector<64x96xf32> to vector<1x32xf32>
    %75 = vector.broadcast %74 : vector<1x32xf32> to vector<16x32xf32>
    %76 = arith.addf %73, %75 : vector<16x32xf32>
    %77 = arith.addf %2, %76 : vector<16x32xf32>
    %78 = vector.extract_strided_slice %1 {offsets = [4, 0], sizes = [1, 32], strides = [1, 1]} : vector<64x96xf32> to vector<1x32xf32>
    %79 = vector.extract_strided_slice %1 {offsets = [5, 0], sizes = [1, 32], strides = [1, 1]} : vector<64x96xf32> to vector<1x32xf32>
    %cst_23 = arith.constant dense<0.000000e+00> : vector<16xf32>
    %80 = vector.multi_reduction <add>, %77, %cst_23 [1] : vector<16x32xf32> to vector<16xf32>
    %81 = vector.shape_cast %80 : vector<16xf32> to vector<16x1xf32>
    %cst_24 = arith.constant 3.200000e+01 : f32
    %82 = vector.broadcast %cst_24 : f32 to vector<16x1xf32>
    %83 = arith.divf %81, %82 : vector<16x1xf32>
    %84 = vector.broadcast %83 : vector<16x1xf32> to vector<16x32xf32>
    %85 = arith.subf %77, %84 : vector<16x32xf32>
    %86 = arith.mulf %85, %85 : vector<16x32xf32>
    %cst_25 = arith.constant dense<0.000000e+00> : vector<16xf32>
    %87 = vector.multi_reduction <add>, %86, %cst_25 [1] : vector<16x32xf32> to vector<16xf32>
    %88 = vector.shape_cast %87 : vector<16xf32> to vector<16x1xf32>
    %cst_26 = arith.constant 3.200000e+01 : f32
    %89 = vector.broadcast %cst_26 : f32 to vector<16x1xf32>
    %90 = arith.divf %88, %89 : vector<16x1xf32>
    %91 = vector.broadcast %83 : vector<16x1xf32> to vector<16x32xf32>
    %92 = arith.subf %77, %91 : vector<16x32xf32>
    %cst_27 = arith.constant 9.99999974E-6 : f32
    %93 = vector.broadcast %cst_27 : f32 to vector<16x1xf32>
    %94 = arith.addf %90, %93 : vector<16x1xf32>
    %95 = math.rsqrt %94 : vector<16x1xf32>
    %96 = vector.broadcast %95 : vector<16x1xf32> to vector<16x32xf32>
    %97 = arith.mulf %92, %96 : vector<16x32xf32>
    %98 = vector.broadcast %78 : vector<1x32xf32> to vector<16x32xf32>
    %99 = arith.mulf %97, %98 : vector<16x32xf32>
    %100 = vector.broadcast %79 : vector<1x32xf32> to vector<16x32xf32>
    %101 = arith.addf %99, %100 : vector<16x32xf32>
    %c2 = arith.constant 2 : index
    %c0_28 = arith.constant 0 : index
    %c0_29 = arith.constant 0 : index
    %102 = vector.load %arg1[%c2, %c0_28, %c0_29] : memref<7x64x96xf32, #tpu.memory_space<vmem>>, vector<1x64x96xf32>
    %103 = vector.shape_cast %102 : vector<1x64x96xf32> to vector<64x96xf32>
    %104 = vector.extract_strided_slice %103 {offsets = [0, 0], sizes = [32, 64], strides = [1, 1]} : vector<64x96xf32> to vector<32x64xf32>
    %cst_30 = arith.constant dense<0.000000e+00> : vector<16x64xf32>
    %105 = tpu.matmul %101, %104, %cst_30 {dimension_numbers = #tpu.dot_dimension_numbers<[1], [0], [0], [1], [0, 0, 1, 1], [], []>} : vector<16x32xf32>, vector<32x64xf32>, vector<16x64xf32> -> vector<16x64xf32>
    %106 = vector.extract_strided_slice %1 {offsets = [6, 0], sizes = [1, 64], strides = [1, 1]} : vector<64x96xf32> to vector<1x64xf32>
    %107 = vector.broadcast %106 : vector<1x64xf32> to vector<16x64xf32>
    %108 = arith.addf %105, %107 : vector<16x64xf32>
    %cst_31 = arith.constant 0.000000e+00 : f32
    %109 = vector.broadcast %cst_31 : f32 to vector<16x64xf32>
    %110 = arith.maximumf %108, %109 : vector<16x64xf32>
    %c3 = arith.constant 3 : index
    %c0_32 = arith.constant 0 : index
    %c0_33 = arith.constant 0 : index
    %111 = vector.load %arg1[%c3, %c0_32, %c0_33] : memref<7x64x96xf32, #tpu.memory_space<vmem>>, vector<1x64x96xf32>
    %112 = vector.shape_cast %111 : vector<1x64x96xf32> to vector<64x96xf32>
    %113 = vector.extract_strided_slice %112 {offsets = [0, 0], sizes = [64, 32], strides = [1, 1]} : vector<64x96xf32> to vector<64x32xf32>
    %cst_34 = arith.constant dense<0.000000e+00> : vector<16x32xf32>
    %114 = tpu.matmul %110, %113, %cst_34 {dimension_numbers = #tpu.dot_dimension_numbers<[1], [0], [0], [1], [0, 0, 1, 1], [], []>} : vector<16x64xf32>, vector<64x32xf32>, vector<16x32xf32> -> vector<16x32xf32>
    %115 = vector.extract_strided_slice %1 {offsets = [7, 0], sizes = [1, 32], strides = [1, 1]} : vector<64x96xf32> to vector<1x32xf32>
    %116 = vector.broadcast %115 : vector<1x32xf32> to vector<16x32xf32>
    %117 = arith.addf %114, %116 : vector<16x32xf32>
    %118 = arith.addf %77, %117 : vector<16x32xf32>
    %c0_35 = arith.constant 0 : index
    %c0_36 = arith.constant 0 : index
    %119 = vector.load %arg2[%c0_35, %c0_36] : memref<16x32xf32, #tpu.memory_space<vmem>>, vector<16x32xf32>
    tpu.vector_store %arg2[%c0_35, %c0_36], %118 {strides = array<i32>} : memref<16x32xf32, #tpu.memory_space<vmem>>, vector<16x32xf32>,
    return
  }
}

</mosaic_0001>

<llo_original>
// kernel: tpu_custom_call.1
$region0: #{tpu_custom_call.1}
  #allocation0 [shape = 'u32[]', space=smem, size = 0x4, offset = 0x4, fixed_abs, tag = 'smem constant byte address 0x4 - core index']
  #allocation1 [shape = 'u32[144,128]{1,0:T(1,128)}', space=vmem, size = 0x12000, scoped, tag = 'internal scratch']
  %s0 = inlined_call_operand.hbm [shape: f32[16,32], index: 0, kind: input, shape index: {}]
  %s1 = inlined_call_operand.hbm [shape: f32[7,64,96], index: 1, kind: input, shape index: {}]
  %s2 = inlined_call_operand.hbm [shape: f32[16,32], index: 2, kind: output, shape index: {}]
  %s3 = sld [smem:[#allocation0]]
  $region26: #{tpu_custom_call.1} parent=0
    _
  %s5 = ssub.s32 1, %s3
  %s6 = scalar_select 0, %s5, %s3
  $region1: #{tpu_custom_call.1} parent=0
    #allocation2 [shape = 'u8[8192]{0}', space=vmem, size = 0x2000, scoped, tag = 'input window, operand 0, single buffered']
    #allocation3 [shape = 's32[1]{0}', space=sflag, size = 0x4, scoped, tag = 'scoped memory for tpu_custom_call.1']
    #allocation4 [shape = 's32[1]{0}', space=sflag, size = 0x4, scoped, tag = 'scoped memory for tpu_custom_call.1']
    #allocation5 [shape = 'u8[229376]{0}', space=vmem, size = 0x38000, scoped, tag = 'input window, operand 1, single buffered']
    #allocation6 [shape = 's32[1]{0}', space=sflag, size = 0x4, scoped, tag = 'scoped memory for tpu_custom_call.1']
    #allocation7 [shape = 'u8[8192]{0}', space=vmem, size = 0x2000, scoped, tag = 'output window, operand 0, single buffered']
    %7 = vsyncpa [#allocation3], 0
    %8 = vsyncpa [#allocation6], 0
    %9 = vsyncpa [#allocation4], 0
    // Predicated region
    $region2: #{tpu_custom_call.1} parent=1 // pred_check
      _
    $region3: #{tpu_custom_call.1} parent=1 // pred_check_branch
      %11 = sbr.rel (0) target = $region5
    $region4: #{tpu_custom_call.1} parent=1 // pred_region
      %s13 = ssub.s32 256, 256
      %14 = vsyncadd [#allocation3], %s13
      %s15 = sshll.u32 [#allocation2], 4
      %s16 = int_to_ptr.vmem [resolvable:$true] %s15
      %21 = dma.hbm_to_vmem [thread:$0]  %s0, 256, %s16, [#allocation3], 128, 128, 8
    $region5: #{tpu_custom_call.1} parent=1 // pred_fallthru
      _
    // Predicated region
    $region6: #{tpu_custom_call.1} parent=1 // pred_check
      _
    $region7: #{tpu_custom_call.1} parent=1 // pred_check_branch
      %23 = sbr.rel (0) target = $region9
    $region8: #{tpu_custom_call.1} parent=1 // pred_region
      %s25 = ssub.s32 7168, 7168
      %26 = vsyncadd [#allocation6], %s25
      %s27 = sshll.u32 [#allocation5], 4
      %s28 = int_to_ptr.vmem [resolvable:$true] %s27
      %33 = dma.hbm_to_vmem [thread:$0]  %s1, 7168, %s28, [#allocation6], 128, 128, 8
    $region9: #{tpu_custom_call.1} parent=1 // pred_fallthru
      _
    // Predicated region
    $region10: #{tpu_custom_call.1} parent=1 // pred_check
      _
    $region11: #{tpu_custom_call.1} parent=1 // pred_check_branch
      %35 = sbr.rel (0) target = $region13
    $region12: #{tpu_custom_call.1} parent=1 // pred_region
      %36 = dma.done [#allocation3], 256
    $region13: #{tpu_custom_call.1} parent=1 // pred_fallthru
      _
    // Predicated region
    $region14: #{tpu_custom_call.1} parent=1 // pred_check
      _
    $region15: #{tpu_custom_call.1} parent=1 // pred_check_branch
      %38 = sbr.rel (0) target = $region17
    $region16: #{tpu_custom_call.1} parent=1 // pred_region
      %39 = dma.done [#allocation6], 7168
    $region17: #{tpu_custom_call.1} parent=1 // pred_fallthru
      _
    %s40 = scalar_lea.vmem [#allocation5], 384
    %v41 = vld [vmem:[%s40] sm:$0xff]
    %v42 = vld [vmem:[#allocation2] sm:$0xff]
    %v43 = vld [vmem:[#allocation2 + $0x8] sm:$0xff]
    %vm44 = vcmask 261120
    %v45 = vsel %vm44, %v42, 0.0
    %46 = vadd.xlane.f32.xlu0 %v45
    %v47 = vpop.xlane.xlu0 %46
    %v48 = vsel %vm44, %v43, 0.0
    %49 = vadd.xlane.f32.xlu0 %v48
    %v50 = vpop.xlane.xlu0 %49
    %v51 = vrcp.pop 32.0
    %v52 = vmul.f32 %v47, %v51
    %v53 = vmul.f32 %v50, %v51
    %v54 = vsub.f32 %v42, %v52
    %v55 = vsub.f32 %v43, %v53
    %v56 = vmul.f32 %v54, %v54
    %v57 = vmul.f32 %v55, %v55
    %v58 = vsel %vm44, %v56, 0.0
    %59 = vadd.xlane.f32.xlu0 %v58
    %v60 = vpop.xlane.xlu0 %59
    %v61 = vsel %vm44, %v57, 0.0
    %62 = vadd.xlane.f32.xlu0 %v61
    %v63 = vpop.xlane.xlu0 %62
    %v64 = vmul.f32 %v60, %v51
    %v65 = vmul.f32 %v63, %v51
    %v66 = vadd.f32 %v64, 1e-05
    %v67 = vadd.f32 %v65, 1e-05
    %v68 = vrsqrt.pop %v66
    %v69 = vrsqrt.pop %v67
    %v70 = vmul.f32 %v54, %v68
    %v71 = vmul.f32 %v55, %v69
    %v72 = vlaneseq
    %v73 = vshrl.u32 %v72, 7
    %v74 = vsub.s32 0, %v73
    %v75 = vrot.slane %v41, %v74
    %v76 = vmul.f32 %v70, %v75
    %v77 = vmul.f32 %v71, %v75
    %v78 = vlaneseq
    %v79 = vshrl.u32 %v78, 7
    %v80 = vsub.s32 1, %v79
    %v81 = vrot.slane %v41, %v80
    %v82 = vadd.f32 %v76, %v81
    %v83 = vadd.f32 %v77, %v81
    %v84 = vld [vmem:[#allocation5] sm:$0xff]
    %v85 = vld [vmem:[#allocation5 + $0x8] sm:$0xff]
    %v86 = vld [vmem:[#allocation5 + $0x10] sm:$0xff]
    %v87 = vld [vmem:[#allocation5 + $0x18] sm:$0xff]
    %v88 = vlaneseq
    %v89 = vshrl.u32 %v88, 7
    %v90 = vsub.s32 2, %v89
    %v91 = vrot.slane %v41, %v90
    %v93 = vsel %vm44, %v82, 0
    %v96 = vsel %vm44, %v83, 0
    %98 = vmatprep.subr.mxu0 0.0
    %99 = vmatpush1.msra.mxu0 0.0
    %100 = vmatprep.subr.mxu0 0.0
    %101 = vmatpush1.msra.mxu0 0.0
    %102 = vmatprep.subr.mxu0 0.0
    %103 = vmatpush1.msra.mxu0 0.0
    %104 = vmatprep.subr.mxu0 0.0
    %105 = vmatpush1.msra.mxu0 0.0
    %106 = vmatprep.subr.mxu0 0.0
    %107 = vmatpush1.msra.mxu0 0.0
    %108 = vmatprep.subr.mxu0 0.0
    %109 = vmatpush1.msra.mxu0 0.0
    %110 = vmatprep.subr.mxu0 0.0
    %111 = vmatpush1.msra.mxu0 0.0
    %112 = vmatprep.subr.mxu0 0.0
    %113 = vmatpush1.msra.mxu0 0.0
    %114 = vmatprep.subr.mxu0 0.0
    %115 = vmatpush1.msra.mxu0 0.0
    %116 = vmatprep.subr.mxu0 0.0
    %117 = vmatpush1.msra.mxu0 0.0
    %118 = vmatprep.subr.mxu0 0.0
    %119 = vmatpush1.msra.mxu0 0.0
    %120 = vmatprep.subr.mxu0 0.0
    %121 = vmatpush1.msra.mxu0 0.0
    %122 = vmatprep.subr.mxu0 0.0
    %123 = vmatpush1.msra.mxu0 %v87
    %124 = vmatprep.subr.mxu0 0.0
    %125 = vmatpush1.msra.mxu0 %v86
    %126 = vmatprep.subr.mxu0 0.0
    %127 = vmatpush1.msra.mxu0 %v85
    %128 = vmatprep.subr.mxu0 0.0
    %129 = vmatpush1.msra.mxu0 %v84
    %130 = vmatprep.subr.mxu0 0.0
    %131 = vmatpush2.msra.mxu0 0.0
    %132 = vmatprep.subr.mxu0 0.0
    %133 = vmatpush2.msra.mxu0 0.0
    %134 = vmatprep.subr.mxu0 0.0
    %135 = vmatpush2.msra.mxu0 0.0
    %136 = vmatprep.subr.mxu0 0.0
    %137 = vmatpush2.msra.mxu0 0.0
    %138 = vmatprep.subr.mxu0 0.0
    %139 = vmatpush2.msra.mxu0 0.0
    %140 = vmatprep.subr.mxu0 0.0
    %141 = vmatpush2.msra.mxu0 0.0
    %142 = vmatprep.subr.mxu0 0.0
    %143 = vmatpush2.msra.mxu0 0.0
    %144 = vmatprep.subr.mxu0 0.0
    %145 = vmatpush2.msra.mxu0 0.0
    %146 = vmatprep.subr.mxu0 0.0
    %147 = vmatpush2.msra.mxu0 0.0
    %148 = vmatprep.subr.mxu0 0.0
    %149 = vmatpush2.msra.mxu0 0.0
    %150 = vmatprep.subr.mxu0 0.0
    %151 = vmatpush2.msra.mxu0 0.0
    %152 = vmatprep.subr.mxu0 0.0
    %153 = vmatpush2.msra.mxu0 0.0
    %154 = vmatprep.subr.mxu0 0.0
    %155 = vmatpush2.msra.mxu0 0.0
    %156 = vmatprep.subr.mxu0 0.0
    %157 = vmatpush2.msra.mxu0 0.0
    %158 = vmatprep.subr.mxu0 0.0
    %159 = vmatpush2.msra.mxu0 0.0
    %160 = vmatprep.subr.mxu0 0.0
    %161 = vmatpush2.msra.mxu0 0.0
    %162 = vmatprep.mubr.f32.mxu0 0.0
    %163 = vmatmul.mubr.f32.gmra.mxu0 %v93
    %v164 = vpop.f32.mrf.mxu0
    %v165 = vadd.f32 %v91, %v164
    %v166 = vpop.f32.mrf.mxu0
    %167 = vmatprep.mubr.f32.mxu0 0.0
    %168 = vmatmul.mubr.f32.gmra.mxu0 %v96
    %v169 = vpop.f32.mrf.mxu0
    %v170 = vadd.f32 %v91, %v169
    %v171 = vpop.f32.mrf.mxu0
    %172 = vdwg.mxu0
    %s173 = scalar_lea.vmem [#allocation5], 256
    %v174 = vld [vmem:[%s173] sm:$0xff]
    %v175 = vld [vmem:[%s173 + $0x8] sm:$0xff]
    %v176 = vld [vmem:[%s173 + $0x10] sm:$0xff]
    %v177 = vld [vmem:[%s173 + $0x18] sm:$0xff]
    %v178 = vld [vmem:[%s173 + $0x20] sm:$0xff]
    %v179 = vld [vmem:[%s173 + $0x28] sm:$0xff]
    %v180 = vld [vmem:[%s173 + $0x30] sm:$0xff]
    %v181 = vld [vmem:[%s173 + $0x38] sm:$0xff]
    %v182 = vmul.f32 %v165, %v174
    %v183 = vmul.f32 %v170, %v175
    %v184 = vmul.f32 %v165, %v176
    %v185 = vmul.f32 %v170, %v177
    %v186 = vmul.f32 %v165, %v178
    %v187 = vmul.f32 %v170, %v179
    %v188 = vmul.f32 %v165, %v180
    %v189 = vmul.f32 %v170, %v181
    %s190 = scalar_lea.vmem [#allocation5], 320
    %v191 = vld [vmem:[%s190] sm:$0xff]
    %v192 = vld [vmem:[%s190 + $0x8] sm:$0xff]
    %v193 = vld [vmem:[%s190 + $0x10] sm:$0xff]
    %v194 = vld [vmem:[%s190 + $0x18] sm:$0xff]
    %v195 = vld [vmem:[%s190 + $0x20] sm:$0xff]
    %v196 = vld [vmem:[%s190 + $0x28] sm:$0xff]
    %v197 = vld [vmem:[%s190 + $0x30] sm:$0xff]
    %v198 = vld [vmem:[%s190 + $0x38] sm:$0xff]
    %201 = vrot.lane.b32.xlu0 %v165, 96
    %v202 = vpop.permute.xlu0 %201
    %203 = vrot.lane.b32.xlu0 %v170, 96
    %v204 = vpop.permute.xlu0 %203
    %v206 = vsel %vm44, %v182, 0
    %v209 = vsel %vm44, %v183, 0
    %v212 = vsel %vm44, %v184, 0
    %v215 = vsel %vm44, %v185, 0
    %v218 = vsel %vm44, %v186, 0
    %v221 = vsel %vm44, %v187, 0
    %v224 = vsel %vm44, %v188, 0
    %v227 = vsel %vm44, %v189, 0
    %v229 = vsel %vm44, %v202, 0
    %v231 = vsel %vm44, %v204, 0
    %233 = vmatprep.subr.mxu0 0.0
    %234 = vmatpush1.xpose.msra.mxu0 0.0
    %235 = vmatprep.subr.mxu0 0.0
    %236 = vmatpush1.xpose.msra.mxu0 0.0
    %237 = vmatprep.subr.mxu0 0.0
    %238 = vmatpush1.xpose.msra.mxu0 0.0
    %239 = vmatprep.subr.mxu0 0.0
    %240 = vmatpush1.xpose.msra.mxu0 0.0
    %241 = vmatprep.subr.mxu0 0.0
    %242 = vmatpush1.xpose.msra.mxu0 0.0
    %243 = vmatprep.subr.mxu0 0.0
    %244 = vmatpush1.xpose.msra.mxu0 0.0
    %245 = vmatprep.subr.mxu0 0.0
    %246 = vmatpush1.xpose.msra.mxu0 0.0
    %247 = vmatprep.subr.mxu0 0.0
    %248 = vmatpush1.xpose.msra.mxu0 0.0
    %249 = vmatprep.subr.mxu0 0.0
    %250 = vmatpush1.xpose.msra.mxu0 0.0
    %251 = vmatprep.subr.mxu0 0.0
    %252 = vmatpush1.xpose.msra.mxu0 0.0
    %253 = vmatprep.subr.mxu0 0.0
    %254 = vmatpush1.xpose.msra.mxu0 0.0
    %255 = vmatprep.subr.mxu0 0.0
    %256 = vmatpush1.xpose.msra.mxu0 0.0
    %257 = vmatprep.subr.mxu0 0.0
    %258 = vmatpush1.xpose.msra.mxu0 0.0
    %259 = vmatprep.subr.mxu0 0.0
    %260 = vmatpush1.xpose.msra.mxu0 0.0
    %261 = vmatprep.subr.mxu0 0.0
    %262 = vmatpush1.xpose.msra.mxu0 %v231
    %263 = vmatprep.subr.mxu0 0.0
    %264 = vmatpush1.xpose.msra.mxu0 %v229
    %265 = vmatprep.subr.mxu0 0.0
    %266 = vmatpush2.xpose.msra.mxu0 0.0
    %267 = vmatprep.subr.mxu0 0.0
    %268 = vmatpush2.xpose.msra.mxu0 0.0
    %269 = vmatprep.subr.mxu0 0.0
    %270 = vmatpush2.xpose.msra.mxu0 0.0
    %271 = vmatprep.subr.mxu0 0.0
    %272 = vmatpush2.xpose.msra.mxu0 0.0
    %273 = vmatprep.subr.mxu0 0.0
    %274 = vmatpush2.xpose.msra.mxu0 0.0
    %275 = vmatprep.subr.mxu0 0.0
    %276 = vmatpush2.xpose.msra.mxu0 0.0
    %277 = vmatprep.subr.mxu0 0.0
    %278 = vmatpush2.xpose.msra.mxu0 0.0
    %279 = vmatprep.subr.mxu0 0.0
    %280 = vmatpush2.xpose.msra.mxu0 0.0
    %281 = vmatprep.subr.mxu0 0.0
    %282 = vmatpush2.xpose.msra.mxu0 0.0
    %283 = vmatprep.subr.mxu0 0.0
    %284 = vmatpush2.xpose.msra.mxu0 0.0
    %285 = vmatprep.subr.mxu0 0.0
    %286 = vmatpush2.xpose.msra.mxu0 0.0
    %287 = vmatprep.subr.mxu0 0.0
    %288 = vmatpush2.xpose.msra.mxu0 0.0
    %289 = vmatprep.subr.mxu0 0.0
    %290 = vmatpush2.xpose.msra.mxu0 0.0
    %291 = vmatprep.subr.mxu0 0.0
    %292 = vmatpush2.xpose.msra.mxu0 0.0
    %293 = vmatprep.subr.mxu0 0.0
    %294 = vmatpush2.xpose.msra.mxu0 0.0
    %295 = vmatprep.subr.mxu0 0.0
    %296 = vmatpush2.xpose.msra.mxu0 0.0
    %297 = vmatprep.mubr.f32.mxu0 0.0
    %298 = vmatmul.mubr.f32.gmra.mxu0 %v206
    %v299 = vpop.f32.mrf.mxu0
    %v300 = vadd.f32 %v191, %v299
    %v301 = vpop.f32.mrf.mxu0
    %302 = vmatprep.mubr.f32.mxu0 0.0
    %303 = vmatmul.mubr.f32.gmra.mxu0 %v209
    %v304 = vpop.f32.mrf.mxu0
    %v305 = vadd.f32 %v192, %v304
    %v306 = vpop.f32.mrf.mxu0
    %307 = vmatprep.mubr.f32.mxu0 0.0
    %308 = vmatmul.mubr.f32.gmra.mxu0 %v212
    %v309 = vpop.f32.mrf.mxu0
    %v310 = vadd.f32 %v193, %v309
    %v311 = vpop.f32.mrf.mxu0
    %312 = vmatprep.mubr.f32.mxu0 0.0
    %313 = vmatmul.mubr.f32.gmra.mxu0 %v215
    %v314 = vpop.f32.mrf.mxu0
    %v315 = vadd.f32 %v194, %v314
    %v316 = vpop.f32.mrf.mxu0
    %317 = vmatprep.mubr.f32.mxu0 0.0
    %318 = vmatmul.mubr.f32.gmra.mxu0 %v218
    %v319 = vpop.f32.mrf.mxu0
    %v320 = vadd.f32 %v195, %v319
    %v321 = vpop.f32.mrf.mxu0
    %322 = vmatprep.mubr.f32.mxu0 0.0
    %323 = vmatmul.mubr.f32.gmra.mxu0 %v221
    %v324 = vpop.f32.mrf.mxu0
    %v325 = vadd.f32 %v196, %v324
    %v326 = vpop.f32.mrf.mxu0
    %327 = vmatprep.mubr.f32.mxu0 0.0
    %328 = vmatmul.mubr.f32.gmra.mxu0 %v224
    %v329 = vpop.f32.mrf.mxu0
    %v330 = vadd.f32 %v197, %v329
    %v331 = vpop.f32.mrf.mxu0
    %332 = vmatprep.mubr.f32.mxu0 0.0
    %333 = vmatmul.mubr.f32.gmra.mxu0 %v227
    %v334 = vpop.f32.mrf.mxu0
    %v335 = vadd.f32 %v198, %v334
    %v336 = vpop.f32.mrf.mxu0
    %337 = vdwg.mxu0
    %vm338 = vcmask 130048
    %v339 = vsel %vm338, %v300, -inf
    %340 = vmax.xlane.f32.xlu0 %v339
    %v341 = vpop.xlane.xlu0 %340
    %v342 = vsel %vm338, %v305, -inf
    %343 = vmax.xlane.f32.xlu0 %v342
    %v344 = vpop.xlane.xlu0 %343
    %v345 = vsel %vm338, %v310, -inf
    %346 = vmax.xlane.f32.xlu0 %v345
    %v347 = vpop.xlane.xlu0 %346
    %v348 = vsel %vm338, %v315, -inf
    %349 = vmax.xlane.f32.xlu0 %v348
    %v350 = vpop.xlane.xlu0 %349
    %v351 = vsel %vm338, %v320, -inf
    %352 = vmax.xlane.f32.xlu0 %v351
    %v353 = vpop.xlane.xlu0 %352
    %v354 = vsel %vm338, %v325, -inf
    %355 = vmax.xlane.f32.xlu0 %v354
    %v356 = vpop.xlane.xlu0 %355
    %v357 = vsel %vm338, %v330, -inf
    %358 = vmax.xlane.f32.xlu0 %v357
    %v359 = vpop.xlane.xlu0 %358
    %v360 = vsel %vm338, %v335, -inf
    %361 = vmax.xlane.f32.xlu0 %v360
    %v362 = vpop.xlane.xlu0 %361
    %v363 = vsub.f32 %v300, %v341
    %v364 = vsub.f32 %v305, %v344
    %v365 = vsub.f32 %v310, %v347
    %v366 = vsub.f32 %v315, %v350
    %v367 = vsub.f32 %v320, %v353
    %v368 = vsub.f32 %v325, %v356
    %v369 = vsub.f32 %v330, %v359
    %v370 = vsub.f32 %v335, %v362
    %v371 = vmul.f32 %v363, 1.442695
    %v372 = vpow.pop %v371
    %v373 = vmul.f32 %v364, 1.442695
    %v374 = vpow.pop %v373
    %v375 = vmul.f32 %v365, 1.442695
    %v376 = vpow.pop %v375
    %v377 = vmul.f32 %v366, 1.442695
    %v378 = vpow.pop %v377
    %v379 = vmul.f32 %v367, 1.442695
    %v380 = vpow.pop %v379
    %v381 = vmul.f32 %v368, 1.442695
    %v382 = vpow.pop %v381
    %v383 = vmul.f32 %v369, 1.442695
    %v384 = vpow.pop %v383
    %v385 = vmul.f32 %v370, 1.442695
    %v386 = vpow.pop %v385
    %v387 = vsel %vm338, %v372, 0.0
    %388 = vadd.xlane.f32.xlu0 %v387
    %v389 = vpop.xlane.xlu0 %388
    %v390 = vsel %vm338, %v374, 0.0
    %391 = vadd.xlane.f32.xlu0 %v390
    %v392 = vpop.xlane.xlu0 %391
    %v393 = vsel %vm338, %v376, 0.0
    %394 = vadd.xlane.f32.xlu0 %v393
    %v395 = vpop.xlane.xlu0 %394
    %v396 = vsel %vm338, %v378, 0.0
    %397 = vadd.xlane.f32.xlu0 %v396
    %v398 = vpop.xlane.xlu0 %397
    %v399 = vsel %vm338, %v380, 0.0
    %400 = vadd.xlane.f32.xlu0 %v399
    %v401 = vpop.xlane.xlu0 %400
    %v402 = vsel %vm338, %v382, 0.0
    %403 = vadd.xlane.f32.xlu0 %v402
    %v404 = vpop.xlane.xlu0 %403
    %v405 = vsel %vm338, %v384, 0.0
    %406 = vadd.xlane.f32.xlu0 %v405
    %v407 = vpop.xlane.xlu0 %406
    %v408 = vsel %vm338, %v386, 0.0
    %409 = vadd.xlane.f32.xlu0 %v408
    %v410 = vpop.xlane.xlu0 %409
    %v411 = vrcp.pop %v389
    %v412 = vrcp.pop %v392
    %v413 = vrcp.pop %v395
    %v414 = vrcp.pop %v398
    %v415 = vrcp.pop %v401
    %v416 = vrcp.pop %v404
    %v417 = vrcp.pop %v407
    %v418 = vrcp.pop %v410
    %v419 = vmul.f32 %v389, %v411
    %v420 = vmul.f32 %v392, %v412
    %v421 = vmul.f32 %v395, %v413
    %v422 = vmul.f32 %v398, %v414
    %v423 = vmul.f32 %v401, %v415
    %v424 = vmul.f32 %v404, %v416
    %v425 = vmul.f32 %v407, %v417
    %v426 = vmul.f32 %v410, %v418
    %v427 = vsub.f32 2.0, %v419
    %v428 = vsub.f32 2.0, %v420
    %v429 = vsub.f32 2.0, %v421
    %v430 = vsub.f32 2.0, %v422
    %v431 = vsub.f32 2.0, %v423
    %v432 = vsub.f32 2.0, %v424
    %v433 = vsub.f32 2.0, %v425
    %v434 = vsub.f32 2.0, %v426
    %v435 = vmul.f32 %v411, %v427
    %v436 = vmul.f32 %v412, %v428
    %v437 = vmul.f32 %v413, %v429
    %v438 = vmul.f32 %v414, %v430
    %v439 = vmul.f32 %v415, %v431
    %v440 = vmul.f32 %v416, %v432
    %v441 = vmul.f32 %v417, %v433
    %v442 = vmul.f32 %v418, %v434
    %v443 = vmul.f32 %v372, %v435
    %v444 = vmul.f32 %v374, %v436
    %v445 = vmul.f32 %v376, %v437
    %v446 = vmul.f32 %v378, %v438
    %v447 = vmul.f32 %v380, %v439
    %v448 = vmul.f32 %v382, %v440
    %v449 = vmul.f32 %v384, %v441
    %v450 = vmul.f32 %v386, %v442
    %451 = vrot.lane.b32.xlu0 %v165, 64
    %v452 = vpop.permute.xlu0 %451
    %453 = vrot.lane.b32.xlu0 %v170, 64
    %v454 = vpop.permute.xlu0 %453
    %v458 = vsel %vm338, %v443, 0
    %v461 = vsel %vm338, %v444, 0
    %v464 = vsel %vm338, %v445, 0
    %v467 = vsel %vm338, %v446, 0
    %v470 = vsel %vm338, %v447, 0
    %v473 = vsel %vm338, %v448, 0
    %v476 = vsel %vm338, %v449, 0
    %v479 = vsel %vm338, %v450, 0
    %481 = vmatprep.subr.mxu0 0.0
    %482 = vmatpush1.msra.mxu0 0.0
    %483 = vmatprep.subr.mxu0 0.0
    %484 = vmatpush1.msra.mxu0 0.0
    %485 = vmatprep.subr.mxu0 0.0
    %486 = vmatpush1.msra.mxu0 0.0
    %487 = vmatprep.subr.mxu0 0.0
    %488 = vmatpush1.msra.mxu0 0.0
    %489 = vmatprep.subr.mxu0 0.0
    %490 = vmatpush1.msra.mxu0 0.0
    %491 = vmatprep.subr.mxu0 0.0
    %492 = vmatpush1.msra.mxu0 0.0
    %493 = vmatprep.subr.mxu0 0.0
    %494 = vmatpush1.msra.mxu0 0.0
    %495 = vmatprep.subr.mxu0 0.0
    %496 = vmatpush1.msra.mxu0 0.0
    %497 = vmatprep.subr.mxu0 0.0
    %498 = vmatpush1.msra.mxu0 0.0
    %499 = vmatprep.subr.mxu0 0.0
    %500 = vmatpush1.msra.mxu0 0.0
    %501 = vmatprep.subr.mxu0 0.0
    %502 = vmatpush1.msra.mxu0 0.0
    %503 = vmatprep.subr.mxu0 0.0
    %504 = vmatpush1.msra.mxu0 0.0
    %505 = vmatprep.subr.mxu0 0.0
    %506 = vmatpush1.msra.mxu0 0.0
    %507 = vmatprep.subr.mxu0 0.0
    %508 = vmatpush1.msra.mxu0 0.0
    %509 = vmatprep.subr.mxu0 0.0
    %510 = vmatpush1.msra.mxu0 %v454
    %511 = vmatprep.subr.mxu0 0.0
    %512 = vmatpush1.msra.mxu0 %v452
    %513 = vmatprep.subr.mxu0 0.0
    %514 = vmatpush2.msra.mxu0 0.0
    %515 = vmatprep.subr.mxu0 0.0
    %516 = vmatpush2.msra.mxu0 0.0
    %517 = vmatprep.subr.mxu0 0.0
    %518 = vmatpush2.msra.mxu0 0.0
    %519 = vmatprep.subr.mxu0 0.0
    %520 = vmatpush2.msra.mxu0 0.0
    %521 = vmatprep.subr.mxu0 0.0
    %522 = vmatpush2.msra.mxu0 0.0
    %523 = vmatprep.subr.mxu0 0.0
    %524 = vmatpush2.msra.mxu0 0.0
    %525 = vmatprep.subr.mxu0 0.0
    %526 = vmatpush2.msra.mxu0 0.0
    %527 = vmatprep.subr.mxu0 0.0
    %528 = vmatpush2.msra.mxu0 0.0
    %529 = vmatprep.subr.mxu0 0.0
    %530 = vmatpush2.msra.mxu0 0.0
    %531 = vmatprep.subr.mxu0 0.0
    %532 = vmatpush2.msra.mxu0 0.0
    %533 = vmatprep.subr.mxu0 0.0
    %534 = vmatpush2.msra.mxu0 0.0
    %535 = vmatprep.subr.mxu0 0.0
    %536 = vmatpush2.msra.mxu0 0.0
    %537 = vmatprep.subr.mxu0 0.0
    %538 = vmatpush2.msra.mxu0 0.0
    %539 = vmatprep.subr.mxu0 0.0
    %540 = vmatpush2.msra.mxu0 0.0
    %541 = vmatprep.subr.mxu0 0.0
    %542 = vmatpush2.msra.mxu0 0.0
    %543 = vmatprep.subr.mxu0 0.0
    %544 = vmatpush2.msra.mxu0 0.0
    %545 = vmatprep.mubr.f32.mxu0 0.0
    %546 = vmatmul.mubr.f32.gmra.mxu0 %v458
    %v547 = vpop.f32.mrf.mxu0
    %v548 = vadd.f32 0.0, %v547
    %v549 = vpop.f32.mrf.mxu0
    %550 = vmatprep.mubr.f32.mxu0 0.0
    %551 = vmatmul.mubr.f32.gmra.mxu0 %v461
    %v552 = vpop.f32.mrf.mxu0
    %v553 = vadd.f32 0.0, %v552
    %v554 = vpop.f32.mrf.mxu0
    %555 = vmatprep.mubr.f32.mxu0 0.0
    %556 = vmatmul.mubr.f32.gmra.mxu0 %v464
    %v557 = vpop.f32.mrf.mxu0
    %v558 = vadd.f32 0.0, %v557
    %v559 = vpop.f32.mrf.mxu0
    %560 = vmatprep.mubr.f32.mxu0 0.0
    %561 = vmatmul.mubr.f32.gmra.mxu0 %v467
    %v562 = vpop.f32.mrf.mxu0
    %v563 = vadd.f32 0.0, %v562
    %v564 = vpop.f32.mrf.mxu0
    %565 = vmatprep.mubr.f32.mxu0 0.0
    %566 = vmatmul.mubr.f32.gmra.mxu0 %v470
    %v567 = vpop.f32.mrf.mxu0
    %v568 = vadd.f32 0.0, %v567
    %v569 = vpop.f32.mrf.mxu0
    %570 = vmatprep.mubr.f32.mxu0 0.0
    %571 = vmatmul.mubr.f32.gmra.mxu0 %v473
    %v572 = vpop.f32.mrf.mxu0
    %v573 = vadd.f32 0.0, %v572
    %v574 = vpop.f32.mrf.mxu0
    %575 = vmatprep.mubr.f32.mxu0 0.0
    %576 = vmatmul.mubr.f32.gmra.mxu0 %v476
    %v577 = vpop.f32.mrf.mxu0
    %v578 = vadd.f32 0.0, %v577
    %v579 = vpop.f32.mrf.mxu0
    %580 = vmatprep.mubr.f32.mxu0 0.0
    %581 = vmatmul.mubr.f32.gmra.mxu0 %v479
    %v582 = vpop.f32.mrf.mxu0
    %v583 = vadd.f32 0.0, %v582
    %v584 = vpop.f32.mrf.mxu0
    %585 = vdwg.mxu0
    %v586 = vmul.f32 %v548, %v174
    %v587 = vmul.f32 %v553, %v175
    %v588 = vmul.f32 %v558, %v176
    %v589 = vmul.f32 %v563, %v177
    %v590 = vmul.f32 %v568, %v178
    %v591 = vmul.f32 %v573, %v179
    %v592 = vmul.f32 %v578, %v180
    %v593 = vmul.f32 %v583, %v181
    %v594 = vadd.f32 %v586, %v588
    %v595 = vadd.f32 %v587, %v589
    %v596 = vadd.f32 %v594, %v590
    %v597 = vadd.f32 %v595, %v591
    %v598 = vadd.f32 %v596, %v592
    %v599 = vadd.f32 %v597, %v593
    %s600 = scalar_lea.vmem [#allocation5], 64
    %v601 = vld [vmem:[%s600] sm:$0xff]
    %v602 = vld [vmem:[%s600 + $0x8] sm:$0xff]
    %v603 = vld [vmem:[%s600 + $0x10] sm:$0xff]
    %v604 = vld [vmem:[%s600 + $0x18] sm:$0xff]
    %v605 = vlaneseq
    %v606 = vshrl.u32 %v605, 7
    %v607 = vsub.s32 3, %v606
    %v608 = vrot.slane %v41, %v607
    %v610 = vsel %vm44, %v598, 0
    %v613 = vsel %vm44, %v599, 0
    %615 = vmatprep.subr.mxu0 0.0
    %616 = vmatpush1.msra.mxu0 0.0
    %617 = vmatprep.subr.mxu0 0.0
    %618 = vmatpush1.msra.mxu0 0.0
    %619 = vmatprep.subr.mxu0 0.0
    %620 = vmatpush1.msra.mxu0 0.0
    %621 = vmatprep.subr.mxu0 0.0
    %622 = vmatpush1.msra.mxu0 0.0
    %623 = vmatprep.subr.mxu0 0.0
    %624 = vmatpush1.msra.mxu0 0.0
    %625 = vmatprep.subr.mxu0 0.0
    %626 = vmatpush1.msra.mxu0 0.0
    %627 = vmatprep.subr.mxu0 0.0
    %628 = vmatpush1.msra.mxu0 0.0
    %629 = vmatprep.subr.mxu0 0.0
    %630 = vmatpush1.msra.mxu0 0.0
    %631 = vmatprep.subr.mxu0 0.0
    %632 = vmatpush1.msra.mxu0 0.0
    %633 = vmatprep.subr.mxu0 0.0
    %634 = vmatpush1.msra.mxu0 0.0
    %635 = vmatprep.subr.mxu0 0.0
    %636 = vmatpush1.msra.mxu0 0.0
    %637 = vmatprep.subr.mxu0 0.0
    %638 = vmatpush1.msra.mxu0 0.0
    %639 = vmatprep.subr.mxu0 0.0
    %640 = vmatpush1.msra.mxu0 %v604
    %641 = vmatprep.subr.mxu0 0.0
    %642 = vmatpush1.msra.mxu0 %v603
    %643 = vmatprep.subr.mxu0 0.0
    %644 = vmatpush1.msra.mxu0 %v602
    %645 = vmatprep.subr.mxu0 0.0
    %646 = vmatpush1.msra.mxu0 %v601
    %647 = vmatprep.subr.mxu0 0.0
    %648 = vmatpush2.msra.mxu0 0.0
    %649 = vmatprep.subr.mxu0 0.0
    %650 = vmatpush2.msra.mxu0 0.0
    %651 = vmatprep.subr.mxu0 0.0
    %652 = vmatpush2.msra.mxu0 0.0
    %653 = vmatprep.subr.mxu0 0.0
    %654 = vmatpush2.msra.mxu0 0.0
    %655 = vmatprep.subr.mxu0 0.0
    %656 = vmatpush2.msra.mxu0 0.0
    %657 = vmatprep.subr.mxu0 0.0
    %658 = vmatpush2.msra.mxu0 0.0
    %659 = vmatprep.subr.mxu0 0.0
    %660 = vmatpush2.msra.mxu0 0.0
    %661 = vmatprep.subr.mxu0 0.0
    %662 = vmatpush2.msra.mxu0 0.0
    %663 = vmatprep.subr.mxu0 0.0
    %664 = vmatpush2.msra.mxu0 0.0
    %665 = vmatprep.subr.mxu0 0.0
    %666 = vmatpush2.msra.mxu0 0.0
    %667 = vmatprep.subr.mxu0 0.0
    %668 = vmatpush2.msra.mxu0 0.0
    %669 = vmatprep.subr.mxu0 0.0
    %670 = vmatpush2.msra.mxu0 0.0
    %671 = vmatprep.subr.mxu0 0.0
    %672 = vmatpush2.msra.mxu0 0.0
    %673 = vmatprep.subr.mxu0 0.0
    %674 = vmatpush2.msra.mxu0 0.0
    %675 = vmatprep.subr.mxu0 0.0
    %676 = vmatpush2.msra.mxu0 0.0
    %677 = vmatprep.subr.mxu0 0.0
    %678 = vmatpush2.msra.mxu0 0.0
    %679 = vmatprep.mubr.f32.mxu0 0.0
    %680 = vmatmul.mubr.f32.gmra.mxu0 %v610
    %v681 = vpop.f32.mrf.mxu0
    %v682 = vadd.f32 %v608, %v681
    %v683 = vpop.f32.mrf.mxu0
    %684 = vmatprep.mubr.f32.mxu0 0.0
    %685 = vmatmul.mubr.f32.gmra.mxu0 %v613
    %v686 = vpop.f32.mrf.mxu0
    %v687 = vadd.f32 %v608, %v686
    %v688 = vpop.f32.mrf.mxu0
    %689 = vdwg.mxu0
    %v690 = vadd.f32 %v42, %v682
    %v691 = vadd.f32 %v43, %v687
    %v692 = vsel %vm44, %v690, 0.0
    %693 = vadd.xlane.f32.xlu0 %v692
    %v694 = vpop.xlane.xlu0 %693
    %v695 = vsel %vm44, %v691, 0.0
    %696 = vadd.xlane.f32.xlu0 %v695
    %v697 = vpop.xlane.xlu0 %696
    %v698 = vmul.f32 %v694, %v51
    %v699 = vmul.f32 %v697, %v51
    %v700 = vsub.f32 %v690, %v698
    %v701 = vsub.f32 %v691, %v699
    %v702 = vmul.f32 %v700, %v700
    %v703 = vmul.f32 %v701, %v701
    %v704 = vsel %vm44, %v702, 0.0
    %705 = vadd.xlane.f32.xlu0 %v704
    %v706 = vpop.xlane.xlu0 %705
    %v707 = vsel %vm44, %v703, 0.0
    %708 = vadd.xlane.f32.xlu0 %v707
    %v709 = vpop.xlane.xlu0 %708
    %v710 = vmul.f32 %v706, %v51
    %v711 = vmul.f32 %v709, %v51
    %v712 = vadd.f32 %v710, 1e-05
    %v713 = vadd.f32 %v711, 1e-05
    %v714 = vrsqrt.pop %v712
    %v715 = vrsqrt.pop %v713
    %v716 = vmul.f32 %v700, %v714
    %v717 = vmul.f32 %v701, %v715
    %v718 = vlaneseq
    %v719 = vshrl.u32 %v718, 7
    %v720 = vsub.s32 4, %v719
    %v721 = vrot.slane %v41, %v720
    %v722 = vmul.f32 %v716, %v721
    %v723 = vmul.f32 %v717, %v721
    %v724 = vlaneseq
    %v725 = vshrl.u32 %v724, 7
    %v726 = vsub.s32 5, %v725
    %v727 = vrot.slane %v41, %v726
    %v728 = vadd.f32 %v722, %v727
    %v729 = vadd.f32 %v723, %v727
    %s730 = scalar_lea.vmem [#allocation5], 128
    %v731 = vld [vmem:[%s730] sm:$0xff]
    %v732 = vld [vmem:[%s730 + $0x8] sm:$0xff]
    %v733 = vld [vmem:[%s730 + $0x10] sm:$0xff]
    %v734 = vld [vmem:[%s730 + $0x18] sm:$0xff]
    %v735 = vlaneseq
    %v736 = vshrl.u32 %v735, 7
    %v737 = vsub.s32 6, %v736
    %v738 = vrot.slane %v41, %v737
    %v740 = vsel %vm44, %v728, 0
    %v743 = vsel %vm44, %v729, 0
    %745 = vmatprep.subr.mxu0 0.0
    %746 = vmatpush1.msra.mxu0 0.0
    %747 = vmatprep.subr.mxu0 0.0
    %748 = vmatpush1.msra.mxu0 0.0
    %749 = vmatprep.subr.mxu0 0.0
    %750 = vmatpush1.msra.mxu0 0.0
    %751 = vmatprep.subr.mxu0 0.0
    %752 = vmatpush1.msra.mxu0 0.0
    %753 = vmatprep.subr.mxu0 0.0
    %754 = vmatpush1.msra.mxu0 0.0
    %755 = vmatprep.subr.mxu0 0.0
    %756 = vmatpush1.msra.mxu0 0.0
    %757 = vmatprep.subr.mxu0 0.0
    %758 = vmatpush1.msra.mxu0 0.0
    %759 = vmatprep.subr.mxu0 0.0
    %760 = vmatpush1.msra.mxu0 0.0
    %761 = vmatprep.subr.mxu0 0.0
    %762 = vmatpush1.msra.mxu0 0.0
    %763 = vmatprep.subr.mxu0 0.0
    %764 = vmatpush1.msra.mxu0 0.0
    %765 = vmatprep.subr.mxu0 0.0
    %766 = vmatpush1.msra.mxu0 0.0
    %767 = vmatprep.subr.mxu0 0.0
    %768 = vmatpush1.msra.mxu0 0.0
    %769 = vmatprep.subr.mxu0 0.0
    %770 = vmatpush1.msra.mxu0 %v734
    %771 = vmatprep.subr.mxu0 0.0
    %772 = vmatpush1.msra.mxu0 %v733
    %773 = vmatprep.subr.mxu0 0.0
    %774 = vmatpush1.msra.mxu0 %v732
    %775 = vmatprep.subr.mxu0 0.0
    %776 = vmatpush1.msra.mxu0 %v731
    %777 = vmatprep.subr.mxu0 0.0
    %778 = vmatpush2.msra.mxu0 0.0
    %779 = vmatprep.subr.mxu0 0.0
    %780 = vmatpush2.msra.mxu0 0.0
    %781 = vmatprep.subr.mxu0 0.0
    %782 = vmatpush2.msra.mxu0 0.0
    %783 = vmatprep.subr.mxu0 0.0
    %784 = vmatpush2.msra.mxu0 0.0
    %785 = vmatprep.subr.mxu0 0.0
    %786 = vmatpush2.msra.mxu0 0.0
    %787 = vmatprep.subr.mxu0 0.0
    %788 = vmatpush2.msra.mxu0 0.0
    %789 = vmatprep.subr.mxu0 0.0
    %790 = vmatpush2.msra.mxu0 0.0
    %791 = vmatprep.subr.mxu0 0.0
    %792 = vmatpush2.msra.mxu0 0.0
    %793 = vmatprep.subr.mxu0 0.0
    %794 = vmatpush2.msra.mxu0 0.0
    %795 = vmatprep.subr.mxu0 0.0
    %796 = vmatpush2.msra.mxu0 0.0
    %797 = vmatprep.subr.mxu0 0.0
    %798 = vmatpush2.msra.mxu0 0.0
    %799 = vmatprep.subr.mxu0 0.0
    %800 = vmatpush2.msra.mxu0 0.0
    %801 = vmatprep.subr.mxu0 0.0
    %802 = vmatpush2.msra.mxu0 0.0
    %803 = vmatprep.subr.mxu0 0.0
    %804 = vmatpush2.msra.mxu0 0.0
    %805 = vmatprep.subr.mxu0 0.0
    %806 = vmatpush2.msra.mxu0 0.0
    %807 = vmatprep.subr.mxu0 0.0
    %808 = vmatpush2.msra.mxu0 0.0
    %809 = vmatprep.mubr.f32.mxu0 0.0
    %810 = vmatmul.mubr.f32.gmra.mxu0 %v740
    %v811 = vpop.f32.mrf.mxu0
    %v812 = vadd.f32 %v738, %v811
    %v813 = vpop.f32.mrf.mxu0
    %814 = vmatprep.mubr.f32.mxu0 0.0
    %815 = vmatmul.mubr.f32.gmra.mxu0 %v743
    %v816 = vpop.f32.mrf.mxu0
    %v817 = vadd.f32 %v738, %v816
    %v818 = vpop.f32.mrf.mxu0
    %819 = vdwg.mxu0
    %v820 = vmax.f32 %v812, 0.0
    %v821 = vmax.f32 %v817, 0.0
    %s822 = scalar_lea.vmem [#allocation5], 192
    %v823 = vld [vmem:[%s822] sm:$0xff]
    %v824 = vld [vmem:[%s822 + $0x8] sm:$0xff]
    %v825 = vld [vmem:[%s822 + $0x10] sm:$0xff]
    %v826 = vld [vmem:[%s822 + $0x18] sm:$0xff]
    %v827 = vld [vmem:[%s822 + $0x20] sm:$0xff]
    %v828 = vld [vmem:[%s822 + $0x28] sm:$0xff]
    %v829 = vld [vmem:[%s822 + $0x30] sm:$0xff]
    %v830 = vld [vmem:[%s822 + $0x38] sm:$0xff]
    %v831 = vlaneseq
    %v832 = vshrl.u32 %v831, 7
    %v833 = vsub.s32 7, %v832
    %v834 = vrot.slane %v41, %v833
    %vm835 = vcmask 523264
    %v837 = vsel %vm835, %v820, 0
    %v840 = vsel %vm835, %v821, 0
    %842 = vmatprep.subr.mxu0 0.0
    %843 = vmatpush1.msra.mxu0 0.0
    %844 = vmatprep.subr.mxu0 0.0
    %845 = vmatpush1.msra.mxu0 0.0
    %846 = vmatprep.subr.mxu0 0.0
    %847 = vmatpush1.msra.mxu0 0.0
    %848 = vmatprep.subr.mxu0 0.0
    %849 = vmatpush1.msra.mxu0 0.0
    %850 = vmatprep.subr.mxu0 0.0
    %851 = vmatpush1.msra.mxu0 0.0
    %852 = vmatprep.subr.mxu0 0.0
    %853 = vmatpush1.msra.mxu0 0.0
    %854 = vmatprep.subr.mxu0 0.0
    %855 = vmatpush1.msra.mxu0 0.0
    %856 = vmatprep.subr.mxu0 0.0
    %857 = vmatpush1.msra.mxu0 0.0
    %858 = vmatprep.subr.mxu0 0.0
    %859 = vmatpush1.msra.mxu0 %v830
    %860 = vmatprep.subr.mxu0 0.0
    %861 = vmatpush1.msra.mxu0 %v829
    %862 = vmatprep.subr.mxu0 0.0
    %863 = vmatpush1.msra.mxu0 %v828
    %864 = vmatprep.subr.mxu0 0.0
    %865 = vmatpush1.msra.mxu0 %v827
    %866 = vmatprep.subr.mxu0 0.0
    %867 = vmatpush1.msra.mxu0 %v826
    %868 = vmatprep.subr.mxu0 0.0
    %869 = vmatpush1.msra.mxu0 %v825
    %870 = vmatprep.subr.mxu0 0.0
    %871 = vmatpush1.msra.mxu0 %v824
    %872 = vmatprep.subr.mxu0 0.0
    %873 = vmatpush1.msra.mxu0 %v823
    %874 = vmatprep.subr.mxu0 0.0
    %875 = vmatpush2.msra.mxu0 0.0
    %876 = vmatprep.subr.mxu0 0.0
    %877 = vmatpush2.msra.mxu0 0.0
    %878 = vmatprep.subr.mxu0 0.0
    %879 = vmatpush2.msra.mxu0 0.0
    %880 = vmatprep.subr.mxu0 0.0
    %881 = vmatpush2.msra.mxu0 0.0
    %882 = vmatprep.subr.mxu0 0.0
    %883 = vmatpush2.msra.mxu0 0.0
    %884 = vmatprep.subr.mxu0 0.0
    %885 = vmatpush2.msra.mxu0 0.0
    %886 = vmatprep.subr.mxu0 0.0
    %887 = vmatpush2.msra.mxu0 0.0
    %888 = vmatprep.subr.mxu0 0.0
    %889 = vmatpush2.msra.mxu0 0.0
    %890 = vmatprep.subr.mxu0 0.0
    %891 = vmatpush2.msra.mxu0 0.0
    %892 = vmatprep.subr.mxu0 0.0
    %893 = vmatpush2.msra.mxu0 0.0
    %894 = vmatprep.subr.mxu0 0.0
    %895 = vmatpush2.msra.mxu0 0.0
    %896 = vmatprep.subr.mxu0 0.0
    %897 = vmatpush2.msra.mxu0 0.0
    %898 = vmatprep.subr.mxu0 0.0
    %899 = vmatpush2.msra.mxu0 0.0
    %900 = vmatprep.subr.mxu0 0.0
    %901 = vmatpush2.msra.mxu0 0.0
    %902 = vmatprep.subr.mxu0 0.0
    %903 = vmatpush2.msra.mxu0 0.0
    %904 = vmatprep.subr.mxu0 0.0
    %905 = vmatpush2.msra.mxu0 0.0
    %906 = vmatprep.mubr.f32.mxu0 0.0
    %907 = vmatmul.mubr.f32.gmra.mxu0 %v837
    %v908 = vpop.f32.mrf.mxu0
    %v909 = vadd.f32 %v834, %v908
    %v910 = vpop.f32.mrf.mxu0
    %911 = vmatprep.mubr.f32.mxu0 0.0
    %912 = vmatmul.mubr.f32.gmra.mxu0 %v840
    %v913 = vpop.f32.mrf.mxu0
    %v914 = vadd.f32 %v834, %v913
    %v915 = vpop.f32.mrf.mxu0
    %916 = vdwg.mxu0
    %v917 = vadd.f32 %v690, %v909
    %v918 = vadd.f32 %v691, %v914
    %919 = vst.msk [vmem:[#allocation7] sm:$0xff] %vm44, %v917
    %920 = vst.msk [vmem:[#allocation7 + $0x8] sm:$0xff] %vm44, %v918
    // Predicated region
    $region18: #{tpu_custom_call.1} parent=1 // pred_check
      _
    $region19: #{tpu_custom_call.1} parent=1 // pred_check_branch
      %922 = sbr.rel (0) target = $region21
    $region20: #{tpu_custom_call.1} parent=1 // pred_region
      %s924 = ssub.s32 256, 256
      %925 = vsyncadd [#allocation4], %s924
      %s926 = sshll.u32 [#allocation7], 4
      %s927 = int_to_ptr.vmem [resolvable:$true] %s926
      %932 = dma.vmem_to_hbm [thread:$0]  %s927, 256, %s2, [#allocation4], 128, 128, 8
    $region21: #{tpu_custom_call.1} parent=1 // pred_fallthru
      _
    // Predicated region
    $region22: #{tpu_custom_call.1} parent=1 // pred_check
      _
    $region23: #{tpu_custom_call.1} parent=1 // pred_check_branch
      %934 = sbr.rel (0) target = $region25
    $region24: #{tpu_custom_call.1} parent=1 // pred_region
      %935 = dma.done [#allocation4], 256
    $region25: #{tpu_custom_call.1} parent=1 // pred_fallthru
      _
    %936 = vsyncpa [#allocation3], 1
    %937 = vsyncpa [#allocation6], 1
    %938 = vsyncpa [#allocation4], 1

</llo_original>
